<compile_context>
chip_gen: v7x
topology: tpu7x:2x2x1
jax: 0.10.0
libtpu: 0.0.40
codegen_flags: <defaults>
</compile_context>

<pallas_src>
import math
import functools

import jax
import jax.numpy as jnp
from jax import lax
from jax.experimental import pallas as pl
from jax.experimental.pallas import tpu as pltpu

_INV_SQRT2 = 1.0 / math.sqrt(2.0)
_SQRT_2_OVER_PI = math.sqrt(2.0 / math.pi)


def ffn_kernel(x_ref, gamma_ref, beta_ref, w1_ref, b1_ref, w2_ref, b2_ref,
               o_ref, acc_ref, xn_ref, *, eps: float, approx_gelu: bool):
    j = pl.program_id(1)
    nj = pl.num_programs(1)

    # ---- LayerNorm (f32) once per row tile; cache bf16 result for all hidden blocks ----
    @pl.when(j == 0)
    def _():
        x = x_ref[...].astype(jnp.float32)
        mean = jnp.mean(x, axis=-1, keepdims=True)
        xc = x - mean
        var = jnp.mean(xc * xc, axis=-1, keepdims=True)
        xn = xc * lax.rsqrt(var + eps)
        xn = xn * gamma_ref[...] + beta_ref[...]
        xn_ref[...] = xn.astype(xn_ref.dtype)          # bf16 MXU operand
        acc_ref[...] = jnp.zeros_like(acc_ref)

    # ---- Linear(dim -> th block): bf16 x bf16 -> f32 accumulate ----
    h = jnp.dot(xn_ref[...], w1_ref[...], preferred_element_type=jnp.float32)
    h = h + b1_ref[...]

    # ---- GELU ----
    if approx_gelu:
        # tanh approximation (EUP path); gated behind a flag since it changes numerics slightly.
        h = 0.5 * h * (1.0 + jnp.tanh(_SQRT_2_OVER_PI * (h + 0.044715 * h * h * h)))
    else:
        # exact erf-based GELU (matches torch.nn.GELU default)
        h = 0.5 * h * (1.0 + lax.erf(h * _INV_SQRT2))

    # ---- Dropout (identity in eval mode) ----

    # ---- Linear(th block -> dim): accumulate over hidden blocks ----
    acc_ref[...] += jnp.dot(h.astype(jnp.bfloat16), w2_ref[...],
                            preferred_element_type=jnp.float32)

    # ---- Finalize: add output bias, write (dropout identity) ----
    @pl.when(j == nj - 1)
    def _():
        o_ref[...] = (acc_ref[...] + b2_ref[...]).astype(o_ref.dtype)


def ffn_pallas(x, gamma, beta, w1, b1, w2, b2, *,
               eps=1e-5, tm=256, th=256, approx_gelu=False):
    """x: (B, S, dim). Weights use (in, out) layout: w1 (dim, hidden), w2 (hidden, dim)."""
    B, S, dim = x.shape
    hidden = w1.shape[1]
    N = B * S

    # Adapt row tile for tiny inputs, pad token count up to a multiple of tm.
    if N < tm:
        tm = max(8, ((N + 7) // 8) * 8)
    assert tm % 8 == 0
    Npad = ((N + tm - 1) // tm) * tm

    # Hidden-block tile.
    th = min(th, hidden)
    assert hidden % th == 0, "hidden must be divisible by hidden tile th"
    assert th == hidden or th % 128 == 0, "hidden tile must be lane-dense"

    x2 = x.reshape(N, dim)
    if Npad != N:
        x2 = jnp.pad(x2, ((0, Npad - N), (0, 0)))

    gamma2 = gamma.reshape(1, dim).astype(jnp.float32)
    beta2 = beta.reshape(1, dim).astype(jnp.float32)
    b1_2 = b1.reshape(1, hidden).astype(jnp.float32)
    b2_2 = b2.reshape(1, dim).astype(jnp.float32)
    w1_bf = w1.astype(jnp.bfloat16)   # halve weight DMA / VMEM; f32 accumulation in MXU
    w2_bf = w2.astype(jnp.bfloat16)

    grid = (Npad // tm, hidden // th)

    # VMEM budget: double-buffered streamed tiles + resident scratch, with 2x headroom.
    itemsize = jnp.dtype(x.dtype).itemsize
    est = (2 * tm * dim * itemsize                 # x tile (in)
           + 2 * tm * dim * itemsize               # out tile
           + 2 * dim * th * 2                      # w1 block (bf16)
           + 2 * th * dim * 2                      # w2 block (bf16)
           + 2 * th * 4                            # b1 block
           + 6 * dim * 4                           # gamma, beta, b2
           + tm * dim * 4                          # acc scratch (f32)
           + tm * dim * 2)                         # xn scratch (bf16)
    vmem_limit = int(min(64 * 1024 * 1024, max(4 * 1024 * 1024, 2 * est)))

    cost = pl.CostEstimate(
        flops=4 * Npad * dim * hidden,                       # two matmuls
        transcendentals=Npad * hidden,                       # erf/tanh per hidden activation
        bytes_accessed=(2 * Npad * dim * itemsize            # x in + out
                        + (dim * hidden + hidden * dim) * 2  # bf16 weights
                        + hidden * 4 + 3 * dim * 4))

    kernel = functools.partial(ffn_kernel, eps=eps, approx_gelu=approx_gelu)

    out2 = pl.pallas_call(
        kernel,
        out_shape=jax.ShapeDtypeStruct((Npad, dim), x.dtype),
        grid_spec=pltpu.PrefetchScalarGridSpec(
            num_scalar_prefetch=0,
            grid=grid,
            in_specs=[
                pl.BlockSpec((tm, dim), lambda i, j: (i, 0)),    # x tile
                pl.BlockSpec((1, dim), lambda i, j: (0, 0)),     # gamma
                pl.BlockSpec((1, dim), lambda i, j: (0, 0)),     # beta
                pl.BlockSpec((dim, th), lambda i, j: (0, j)),    # w1 block (bf16)
                pl.BlockSpec((1, th), lambda i, j: (0, j)),      # b1 block
                pl.BlockSpec((th, dim), lambda i, j: (j, 0)),    # w2 block (bf16)
                pl.BlockSpec((1, dim), lambda i, j: (0, 0)),     # b2
            ],
            out_specs=pl.BlockSpec((tm, dim), lambda i, j: (i, 0)),
            scratch_shapes=[
                pltpu.VMEM((tm, dim), jnp.float32),     # accumulator
                pltpu.VMEM((tm, dim), jnp.bfloat16),    # cached LayerNorm output
            ],
        ),
        compiler_params=pltpu.CompilerParams(
            dimension_semantics=("parallel", "arbitrary"),
            vmem_limit_bytes=vmem_limit),
        cost_estimate=cost,
    )(x2, gamma2, beta2, w1_bf, b1_2, w2_bf, b2_2)

    return out2[:N].reshape(B, S, dim)


def ffn_reference(x, gamma, beta, w1, b1, w2, b2, eps=1e-5):
    x = x.astype(jnp.float32)
    mean = jnp.mean(x, axis=-1, keepdims=True)
    var = jnp.mean((x - mean) ** 2, axis=-1, keepdims=True)
    xn = (x - mean) / jnp.sqrt(var + eps) * gamma + beta
    h = xn @ w1 + b1
    h = 0.5 * h * (1.0 + lax.erf(h / math.sqrt(2.0)))
    return h @ w2 + b2


if __name__ == "__main__":
    key = jax.random.PRNGKey(0)
    # Small but lane-dense shapes (dim/hidden multiples of 128), two hidden blocks exercised.
    B, S, dim, hidden = 2, 8, 128, 512

    ks = jax.random.split(key, 6)
    x = jax.random.normal(ks[0], (B, S, dim), dtype=jnp.float32)

    # Deterministic parameter init (PyTorch-like uniform fan-in for linears).
    gamma = jnp.ones((dim,), dtype=jnp.float32)
    beta = jnp.zeros((dim,), dtype=jnp.float32)
    lim1 = 1.0 / math.sqrt(dim)
    lim2 = 1.0 / math.sqrt(hidden)
    w1 = jax.random.uniform(ks[1], (dim, hidden), minval=-lim1, maxval=lim1, dtype=jnp.float32)
    b1 = jax.random.uniform(ks[2], (hidden,), minval=-lim1, maxval=lim1, dtype=jnp.float32)
    w2 = jax.random.uniform(ks[3], (hidden, dim), minval=-lim2, maxval=lim2, dtype=jnp.float32)
    b2 = jax.random.uniform(ks[4], (dim,), minval=-lim2, maxval=lim2, dtype=jnp.float32)

    out = ffn_pallas(x, gamma, beta, w1, b1, w2, b2, th=256)
    out = jax.block_until_ready(out)

    ref = ffn_reference(x, gamma, beta, w1, b1, w2, b2)
    assert out.shape == (B, S, dim)
    # Tolerance relaxed vs f32 reference because matmul operands are bf16 (f32 accumulation).
    assert jnp.allclose(out.astype(jnp.float32), ref, atol=5e-2, rtol=5e-2), \
        f"max err = {jnp.max(jnp.abs(out.astype(jnp.float32) - ref))}"

    print("KERNEL_OK")
</pallas_src>

<mosaic_0001>
module attributes {stable_mosaic.version = 11 : i64} {
  func.func @ffn_kernel(%arg0: i32, %arg1: i32, %arg2: memref<16x128xf32, #tpu.memory_space<vmem>>, %arg3: memref<1x128xf32, #tpu.memory_space<vmem>>, %arg4: memref<1x128xf32, #tpu.memory_space<vmem>>, %arg5: memref<128x256xbf16, #tpu.memory_space<vmem>>, %arg6: memref<1x256xf32, #tpu.memory_space<vmem>>, %arg7: memref<256x128xbf16, #tpu.memory_space<vmem>>, %arg8: memref<1x128xf32, #tpu.memory_space<vmem>>, %arg9: memref<16x128xf32, #tpu.memory_space<vmem>>, %arg10: memref<16x128xf32, #tpu.memory_space<vmem>>, %arg11: memref<16x128xbf16, #tpu.memory_space<vmem>>) attributes {dimension_semantics = [#tpu.dimension_semantics<parallel>, #tpu.dimension_semantics<arbitrary>], iteration_bounds = array<i64: 1, 2>, scalar_prefetch = 0 : i64, scratch_operands = 2 : i64, tpu.core_type = #tpu.core_type<tc>, window_params = [{transform_indices = @transform_0, window_bounds = array<i64: 16, 128>}, {pipeline_mode = #tpu.pipeline_mode<synchronous>, transform_indices = @transform_1, window_bounds = array<i64: 1, 128>}, {pipeline_mode = #tpu.pipeline_mode<synchronous>, transform_indices = @transform_2, window_bounds = array<i64: 1, 128>}, {transform_indices = @transform_3, window_bounds = array<i64: 128, 256>}, {transform_indices = @transform_4, window_bounds = array<i64: 1, 256>}, {transform_indices = @transform_5, window_bounds = array<i64: 256, 128>}, {pipeline_mode = #tpu.pipeline_mode<synchronous>, transform_indices = @transform_6, window_bounds = array<i64: 1, 128>}, {transform_indices = @transform_7, window_bounds = array<i64: 16, 128>}]} {
    %c0_i32 = arith.constant 0 : i32
    %0 = arith.cmpi eq, %arg1, %c0_i32 : i32
    %1 = arith.extui %0 : i1 to i32
    %c0_i32_0 = arith.constant 0 : i32
    %2 = arith.cmpi ne, %1, %c0_i32_0 : i32
    scf.if %2 {
      %c0_17 = arith.constant 0 : index
      %c0_18 = arith.constant 0 : index
      %26 = vector.load %arg2[%c0_17, %c0_18] : memref<16x128xf32, #tpu.memory_space<vmem>>, vector<16x128xf32>
      %cst_19 = arith.constant dense<0.000000e+00> : vector<16xf32>
      %27 = vector.multi_reduction <add>, %26, %cst_19 [1] : vector<16x128xf32> to vector<16xf32>
      %28 = vector.shape_cast %27 : vector<16xf32> to vector<16x1xf32>
      %cst_20 = arith.constant 1.280000e+02 : f32
      %29 = vector.broadcast %cst_20 : f32 to vector<16x1xf32>
      %30 = arith.divf %28, %29 : vector<16x1xf32>
      %31 = vector.broadcast %30 : vector<16x1xf32> to vector<16x128xf32>
      %32 = arith.subf %26, %31 : vector<16x128xf32>
      %33 = arith.mulf %32, %32 : vector<16x128xf32>
      %cst_21 = arith.constant dense<0.000000e+00> : vector<16xf32>
      %34 = vector.multi_reduction <add>, %33, %cst_21 [1] : vector<16x128xf32> to vector<16xf32>
      %35 = vector.shape_cast %34 : vector<16xf32> to vector<16x1xf32>
      %cst_22 = arith.constant 1.280000e+02 : f32
      %36 = vector.broadcast %cst_22 : f32 to vector<16x1xf32>
      %37 = arith.divf %35, %36 : vector<16x1xf32>
      %cst_23 = arith.constant 9.99999974E-6 : f32
      %38 = vector.broadcast %cst_23 : f32 to vector<16x1xf32>
      %39 = arith.addf %37, %38 : vector<16x1xf32>
      %40 = math.rsqrt %39 : vector<16x1xf32>
      %41 = vector.broadcast %40 : vector<16x1xf32> to vector<16x128xf32>
      %42 = arith.mulf %32, %41 : vector<16x128xf32>
      %c0_24 = arith.constant 0 : index
      %c0_25 = arith.constant 0 : index
      %43 = vector.load %arg3[%c0_24, %c0_25] : memref<1x128xf32, #tpu.memory_space<vmem>>, vector<1x128xf32>
      %44 = vector.broadcast %43 : vector<1x128xf32> to vector<16x128xf32>
      %45 = arith.mulf %42, %44 : vector<16x128xf32>
      %c0_26 = arith.constant 0 : index
      %c0_27 = arith.constant 0 : index
      %46 = vector.load %arg4[%c0_26, %c0_27] : memref<1x128xf32, #tpu.memory_space<vmem>>, vector<1x128xf32>
      %47 = vector.broadcast %46 : vector<1x128xf32> to vector<16x128xf32>
      %48 = arith.addf %45, %47 : vector<16x128xf32>
      %49 = arith.truncf %48 : vector<16x128xf32> to vector<16x128xbf16>
      %c0_28 = arith.constant 0 : index
      %c0_29 = arith.constant 0 : index
      %50 = vector.load %arg11[%c0_28, %c0_29] : memref<16x128xbf16, #tpu.memory_space<vmem>>, vector<16x128xbf16>
      tpu.vector_store %arg11[%c0_28, %c0_29], %49 {strides = array<i32>} : memref<16x128xbf16, #tpu.memory_space<vmem>>, vector<16x128xbf16>,
      %cst_30 = arith.constant 0.000000e+00 : f32
      %51 = vector.broadcast %cst_30 : f32 to vector<16x128xf32>
      %c0_31 = arith.constant 0 : index
      %c0_32 = arith.constant 0 : index
      %52 = vector.load %arg10[%c0_31, %c0_32] : memref<16x128xf32, #tpu.memory_space<vmem>>, vector<16x128xf32>
      tpu.vector_store %arg10[%c0_31, %c0_32], %51 {strides = array<i32>} : memref<16x128xf32, #tpu.memory_space<vmem>>, vector<16x128xf32>,
    } else {
    }
    %c0 = arith.constant 0 : index
    %c0_1 = arith.constant 0 : index
    %3 = vector.load %arg11[%c0, %c0_1] : memref<16x128xbf16, #tpu.memory_space<vmem>>, vector<16x128xbf16>
    %c0_2 = arith.constant 0 : index
    %c0_3 = arith.constant 0 : index
    %4 = vector.load %arg5[%c0_2, %c0_3] : memref<128x256xbf16, #tpu.memory_space<vmem>>, vector<128x256xbf16>
    %cst = arith.constant dense<0.000000e+00> : vector<16x256xf32>
    %5 = tpu.matmul %3, %4, %cst {dimension_numbers = #tpu.dot_dimension_numbers<[1], [0], [0], [1], [0, 0, 1, 1], [], []>} : vector<16x128xbf16>, vector<128x256xbf16>, vector<16x256xf32> -> vector<16x256xf32>
    %c0_4 = arith.constant 0 : index
    %c0_5 = arith.constant 0 : index
    %6 = vector.load %arg6[%c0_4, %c0_5] : memref<1x256xf32, #tpu.memory_space<vmem>>, vector<1x256xf32>
    %7 = vector.broadcast %6 : vector<1x256xf32> to vector<16x256xf32>
    %8 = arith.addf %5, %7 : vector<16x256xf32>
    %cst_6 = arith.constant 5.000000e-01 : f32
    %9 = vector.broadcast %cst_6 : f32 to vector<16x256xf32>
    %10 = arith.mulf %9, %8 : vector<16x256xf32>
    %cst_7 = arith.constant 0.707106769 : f32
    %11 = vector.broadcast %cst_7 : f32 to vector<16x256xf32>
    %12 = arith.mulf %8, %11 : vector<16x256xf32>
    %13 = math.erf %12 : vector<16x256xf32>
    %cst_8 = arith.constant 1.000000e+00 : f32
    %14 = vector.broadcast %cst_8 : f32 to vector<16x256xf32>
    %15 = arith.addf %14, %13 : vector<16x256xf32>
    %16 = arith.mulf %10, %15 : vector<16x256xf32>
    %c0_9 = arith.constant 0 : index
    %c0_10 = arith.constant 0 : index
    %17 = vector.load %arg10[%c0_9, %c0_10] : memref<16x128xf32, #tpu.memory_space<vmem>>, vector<16x128xf32>
    %18 = arith.truncf %16 : vector<16x256xf32> to vector<16x256xbf16>
    %c0_11 = arith.constant 0 : index
    %c0_12 = arith.constant 0 : index
    %19 = vector.load %arg7[%c0_11, %c0_12] : memref<256x128xbf16, #tpu.memory_space<vmem>>, vector<256x128xbf16>
    %cst_13 = arith.constant dense<0.000000e+00> : vector<16x128xf32>
    %20 = tpu.matmul %18, %19, %cst_13 {dimension_numbers = #tpu.dot_dimension_numbers<[1], [0], [0], [1], [0, 0, 1, 1], [], []>} : vector<16x256xbf16>, vector<256x128xbf16>, vector<16x128xf32> -> vector<16x128xf32>
    %21 = arith.addf %17, %20 : vector<16x128xf32>
    %c0_14 = arith.constant 0 : index
    %c0_15 = arith.constant 0 : index
    %22 = vector.load %arg10[%c0_14, %c0_15] : memref<16x128xf32, #tpu.memory_space<vmem>>, vector<16x128xf32>
    tpu.vector_store %arg10[%c0_14, %c0_15], %21 {strides = array<i32>} : memref<16x128xf32, #tpu.memory_space<vmem>>, vector<16x128xf32>,
    %c1_i32 = arith.constant 1 : i32
    %23 = arith.cmpi eq, %arg1, %c1_i32 : i32
    %24 = arith.extui %23 : i1 to i32
    %c0_i32_16 = arith.constant 0 : i32
    %25 = arith.cmpi ne, %24, %c0_i32_16 : i32
    scf.if %25 {
      %c0_17 = arith.constant 0 : index
      %c0_18 = arith.constant 0 : index
      %26 = vector.load %arg10[%c0_17, %c0_18] : memref<16x128xf32, #tpu.memory_space<vmem>>, vector<16x128xf32>
      %c0_19 = arith.constant 0 : index
      %c0_20 = arith.constant 0 : index
      %27 = vector.load %arg8[%c0_19, %c0_20] : memref<1x128xf32, #tpu.memory_space<vmem>>, vector<1x128xf32>
      %28 = vector.broadcast %27 : vector<1x128xf32> to vector<16x128xf32>
      %29 = arith.addf %26, %28 : vector<16x128xf32>
      %c0_21 = arith.constant 0 : index
      %c0_22 = arith.constant 0 : index
      %30 = vector.load %arg9[%c0_21, %c0_22] : memref<16x128xf32, #tpu.memory_space<vmem>>, vector<16x128xf32>
      tpu.vector_store %arg9[%c0_21, %c0_22], %29 {strides = array<i32>} : memref<16x128xf32, #tpu.memory_space<vmem>>, vector<16x128xf32>,
    } else {
    }
    return
  }
  func.func @transform_0(%arg0: i32, %arg1: i32) -> (i32, i32) {
    %c0_i32 = arith.constant 0 : i32
    %c0_i32_0 = arith.constant 0 : i32
    return %arg0, %c0_i32 : i32, i32
  }
  func.func @transform_1(%arg0: i32, %arg1: i32) -> (i32, i32) {
    %c0_i32 = arith.constant 0 : i32
    %c0_i32_0 = arith.constant 0 : i32
    %c0_i32_1 = arith.constant 0 : i32
    return %c0_i32, %c0_i32_0 : i32, i32
  }
  func.func @transform_2(%arg0: i32, %arg1: i32) -> (i32, i32) {
    %c0_i32 = arith.constant 0 : i32
    %c0_i32_0 = arith.constant 0 : i32
    %c0_i32_1 = arith.constant 0 : i32
    return %c0_i32, %c0_i32_0 : i32, i32
  }
  func.func @transform_3(%arg0: i32, %arg1: i32) -> (i32, i32) {
    %c0_i32 = arith.constant 0 : i32
    %c0_i32_0 = arith.constant 0 : i32
    return %c0_i32, %arg1 : i32, i32
  }
  func.func @transform_4(%arg0: i32, %arg1: i32) -> (i32, i32) {
    %c0_i32 = arith.constant 0 : i32
    %c0_i32_0 = arith.constant 0 : i32
    return %c0_i32, %arg1 : i32, i32
  }
  func.func @transform_5(%arg0: i32, %arg1: i32) -> (i32, i32) {
    %c0_i32 = arith.constant 0 : i32
    %c0_i32_0 = arith.constant 0 : i32
    return %arg1, %c0_i32 : i32, i32
  }
  func.func @transform_6(%arg0: i32, %arg1: i32) -> (i32, i32) {
    %c0_i32 = arith.constant 0 : i32
    %c0_i32_0 = arith.constant 0 : i32
    %c0_i32_1 = arith.constant 0 : i32
    return %c0_i32, %c0_i32_0 : i32, i32
  }
  func.func @transform_7(%arg0: i32, %arg1: i32) -> (i32, i32) {
    %c0_i32 = arith.constant 0 : i32
    %c0_i32_0 = arith.constant 0 : i32
    return %arg0, %c0_i32 : i32, i32
  }
}

</mosaic_0001>

<llo_original>
// kernel: tpu_custom_call.1
$region0: #{tpu_custom_call.1}
  #allocation0 [shape = 'u32[]', space=smem, size = 0x4, offset = 0x4, fixed_abs, tag = 'smem constant byte address 0x4 - core index']
  #allocation1 [shape = 'u32[144,128]{1,0:T(1,128)}', space=vmem, size = 0x12000, scoped, tag = 'internal scratch']
  #allocation2 [shape = 'f32[16,128]{1,0:T(8,128)}', space=vmem, size = 0x2000, scoped, tag = 'scratch operand']
  #allocation3 [shape = 'bf16[16,128]{1,0:T(16,128)(2,1)}', space=vmem, size = 0x1000, scoped, tag = 'scratch operand']
  %s0 = inlined_call_operand.hbm [shape: f32[16,128], index: 0, kind: input, shape index: {}]
  %s1 = inlined_call_operand.vmem [shape: f32[1,128], index: 1, kind: input, shape index: {}]
  %s2 = inlined_call_operand.vmem [shape: f32[1,128], index: 2, kind: input, shape index: {}]
  %s3 = inlined_call_operand.hbm [shape: bf16[128,512], index: 3, kind: input, shape index: {}]
  %s4 = inlined_call_operand.vmem [shape: f32[1,512], index: 4, kind: input, shape index: {}]
  %s5 = inlined_call_operand.hbm [shape: bf16[512,128], index: 5, kind: input, shape index: {}]
  %s6 = inlined_call_operand.vmem [shape: f32[1,128], index: 6, kind: input, shape index: {}]
  %s7 = inlined_call_operand.hbm [shape: f32[16,128], index: 7, kind: output, shape index: {}]
  %s8 = sld [smem:[#allocation0]]
  $region81: #{tpu_custom_call.1} parent=0
    _
  %s10 = ssub.s32 1, %s8
  %s11 = scalar_select 0, %s10, %s8
  $region1: #{tpu_custom_call.1} parent=0
    #allocation4 [shape = 'u8[8192]{0}', space=vmem, size = 0x2000, scoped, tag = 'input window, operand 0, single buffered']
    #allocation5 [shape = 's32[2]{0}', space=sflag, size = 0x8, scoped, tag = 'scoped memory for tpu_custom_call.1']
    #allocation6 [shape = 's32[2]{0}', space=sflag, size = 0x8, scoped, tag = 'scoped memory for tpu_custom_call.1']
    #allocation7 [shape = 'u8[131072]{0}', space=vmem, size = 0x20000, scoped, tag = 'input window, operand 3']
    #allocation8 [shape = 's32[2]{0}', space=sflag, size = 0x8, scoped, tag = 'scoped memory for tpu_custom_call.1']
    #allocation9 [shape = 'u8[131072]{0}', space=vmem, size = 0x20000, scoped, tag = 'input window, operand 5']
    #allocation10 [shape = 'u8[8192]{0}', space=vmem, size = 0x2000, scoped, tag = 'output window, operand 0, single buffered']
    %12 = vsyncpa [#allocation5], 0
    %13 = vsyncpa [#allocation8], 0
    %s14 = scalar_lea.sflag [#allocation8], 1
    %15 = vsyncpa %s14, 0
    %16 = vsyncpa [#allocation6], 0
    loop: start=0, step=1, limit=4
    $region2: #{tpu_custom_call.1} parent=1 // loop_pre_header
      _
    $region3: #{tpu_custom_call.1} parent=1 // loop_header
      %s18 = sphi 0, %s22
      %p19 = scmp.ge.s32.totalorder %s18, 4
      %s25 = sphi 0, %s37
      %s26 = sphi 0, %s33
      %s27 = sphi 0, %s25
      %s28 = sphi 0, %s26
      %s29 = sphi 0, %s27
      %s30 = sphi 0, %s28
      %s40 = sphi 0, %s42
      %s43 = sphi 0, %s40
      %s44 = sphi 0, %s43
      %s60 = sphi 0, %s44
      %s64 = sphi 0, %s64
      %s66 = sphi 0, %s64
      %s67 = sphi 0, %s66
      %s81 = sphi 0, %s67
      %s85 = sphi 0, %s85
      %s87 = sphi 0, %s85
      %s88 = sphi 0, %s87
      %s102 = sphi 0, %s88
      %s108 = sphi 0, %s110
      %s111 = sphi 0, %s108
      %s112 = sphi 0, %s111
      %s128 = sphi 0, %s112
      %s134 = sphi 0, %s136
      %s137 = sphi 0, %s134
      %s138 = sphi 0, %s137
      %s154 = sphi 0, %s138
      %s160 = sphi 0, %s162
      %s163 = sphi 0, %s160
      %s164 = sphi 0, %s163
      %s180 = sphi 0, %s164
      %s184 = sphi 0, %s184
      %s186 = sphi 0, %s184
      %s187 = sphi 0, %s186
      %s201 = sphi 0, %s187
      %s207 = sphi 0, %s209
      %s210 = sphi 0, %s207
      %s211 = sphi 0, %s210
      %s227 = sphi 0, %s211
    $region4: #{tpu_custom_call.1} parent=1 // loop_header_branch
      %21 = sbr.rel (%p19) target = $region8
    $region5: #{tpu_custom_call.1} parent=1 // loop_body
      %s23 = ssub.s32 %s18, 1
      %s24 = ssub.s32 %s18, 2
      %s31 = sadd.s32 1, %s26
      %p32 = scmp.ge.s32.totalorder %s31, 2
      %s33 = scalar_select %p32, 0, %s31
      %s34 = sadd.s32 1, %s25
      %s35 = scalar_select %p32, %s34, %s25
      %p36 = scmp.ge.s32.totalorder %s35, 1
      %s37 = scalar_select %p36, 0, %s35
      %s38 = ssub.s32 %s25, %s37
      %p39 = scmp.eq.s32.totalorder %s38, 0
      %s41 = sadd.s32 %s40, 1
      %s42 = scalar_select %p39, %s40, %s41
      %p45 = pneg %p39
      %p46 = scmp.eq.s32.totalorder %s18, 1
      %p47 = por %p45, %p46
      %p48 = scmp.ne.s32.totalorder %s40, %s43
      %p49 = scmp.eq.s32.totalorder %s18, 0
      %p50 = por %p48, %p49
      %p51 = scmp.ne.s32.totalorder %s40, %s43
      %p52 = scmp.eq.s32.totalorder %s23, 1
      %p53 = por %p51, %p52
      %p54 = scmp.ne.s32.totalorder %s43, %s44
      %p55 = scmp.eq.s32.totalorder %s23, 0
      %p56 = por %p54, %p55
      %p57 = scmp.ne.s32.totalorder %s43, %s44
      %p58 = scmp.eq.s32.totalorder %s24, 1
      %p59 = por %p57, %p58
      %p61 = scmp.ne.s32.totalorder %s44, %s60
      %p62 = scmp.eq.s32.totalorder %s24, 0
      %p63 = por %p61, %p62
      %s65 = sadd.s32 %s64, 1
      %p68 = scmp.eq.s32.totalorder %s18, 1
      %p69 = scmp.ne.s32.totalorder %s64, %s66
      %p70 = scmp.eq.s32.totalorder %s18, 0
      %p71 = por %p69, %p70
      %p72 = scmp.ne.s32.totalorder %s64, %s66
      %p73 = scmp.eq.s32.totalorder %s23, 1
      %p74 = por %p72, %p73
      %p75 = scmp.ne.s32.totalorder %s66, %s67
      %p76 = scmp.eq.s32.totalorder %s23, 0
      %p77 = por %p75, %p76
      %p78 = scmp.ne.s32.totalorder %s66, %s67
      %p79 = scmp.eq.s32.totalorder %s24, 1
      %p80 = por %p78, %p79
      %p82 = scmp.ne.s32.totalorder %s67, %s81
      %p83 = scmp.eq.s32.totalorder %s24, 0
      %p84 = por %p82, %p83
      %s86 = sadd.s32 %s85, 1
      %p89 = scmp.eq.s32.totalorder %s18, 1
      %p90 = scmp.ne.s32.totalorder %s85, %s87
      %p91 = scmp.eq.s32.totalorder %s18, 0
      %p92 = por %p90, %p91
      %p93 = scmp.ne.s32.totalorder %s85, %s87
      %p94 = scmp.eq.s32.totalorder %s23, 1
      %p95 = por %p93, %p94
      %p96 = scmp.ne.s32.totalorder %s87, %s88
      %p97 = scmp.eq.s32.totalorder %s23, 0
      %p98 = por %p96, %p97
      %p99 = scmp.ne.s32.totalorder %s87, %s88
      %p100 = scmp.eq.s32.totalorder %s24, 1
      %p101 = por %p99, %p100
      %p103 = scmp.ne.s32.totalorder %s88, %s102
      %p104 = scmp.eq.s32.totalorder %s24, 0
      %p105 = por %p103, %p104
      %s106 = ssub.s32 %s26, %s33
      %p107 = scmp.eq.s32.totalorder %s106, 0
      %s109 = sadd.s32 %s108, 1
      %s110 = scalar_select %p107, %s108, %s109
      %p113 = pneg %p107
      %p114 = scmp.eq.s32.totalorder %s18, 1
      %p115 = por %p113, %p114
      %p116 = scmp.ne.s32.totalorder %s108, %s111
      %p117 = scmp.eq.s32.totalorder %s18, 0
      %p118 = por %p116, %p117
      %p119 = scmp.ne.s32.totalorder %s108, %s111
      %p120 = scmp.eq.s32.totalorder %s23, 1
      %p121 = por %p119, %p120
      %p122 = scmp.ne.s32.totalorder %s111, %s112
      %p123 = scmp.eq.s32.totalorder %s23, 0
      %p124 = por %p122, %p123
      %p125 = scmp.ne.s32.totalorder %s111, %s112
      %p126 = scmp.eq.s32.totalorder %s24, 1
      %p127 = por %p125, %p126
      %p129 = scmp.ne.s32.totalorder %s112, %s128
      %p130 = scmp.eq.s32.totalorder %s24, 0
      %p131 = por %p129, %p130
      %s132 = ssub.s32 %s26, %s33
      %p133 = scmp.eq.s32.totalorder %s132, 0
      %s135 = sadd.s32 %s134, 1
      %s136 = scalar_select %p133, %s134, %s135
      %p139 = pneg %p133
      %p140 = scmp.eq.s32.totalorder %s18, 1
      %p141 = por %p139, %p140
      %p142 = scmp.ne.s32.totalorder %s134, %s137
      %p143 = scmp.eq.s32.totalorder %s18, 0
      %p144 = por %p142, %p143
      %p145 = scmp.ne.s32.totalorder %s134, %s137
      %p146 = scmp.eq.s32.totalorder %s23, 1
      %p147 = por %p145, %p146
      %p148 = scmp.ne.s32.totalorder %s137, %s138
      %p149 = scmp.eq.s32.totalorder %s23, 0
      %p150 = por %p148, %p149
      %p151 = scmp.ne.s32.totalorder %s137, %s138
      %p152 = scmp.eq.s32.totalorder %s24, 1
      %p153 = por %p151, %p152
      %p155 = scmp.ne.s32.totalorder %s138, %s154
      %p156 = scmp.eq.s32.totalorder %s24, 0
      %p157 = por %p155, %p156
      %s158 = ssub.s32 %s26, %s33
      %p159 = scmp.eq.s32.totalorder %s158, 0
      %s161 = sadd.s32 %s160, 1
      %s162 = scalar_select %p159, %s160, %s161
      %p165 = pneg %p159
      %p166 = scmp.eq.s32.totalorder %s18, 1
      %p167 = por %p165, %p166
      %p168 = scmp.ne.s32.totalorder %s160, %s163
      %p169 = scmp.eq.s32.totalorder %s18, 0
      %p170 = por %p168, %p169
      %p171 = scmp.ne.s32.totalorder %s160, %s163
      %p172 = scmp.eq.s32.totalorder %s23, 1
      %p173 = por %p171, %p172
      %p174 = scmp.ne.s32.totalorder %s163, %s164
      %p175 = scmp.eq.s32.totalorder %s23, 0
      %p176 = por %p174, %p175
      %p177 = scmp.ne.s32.totalorder %s163, %s164
      %p178 = scmp.eq.s32.totalorder %s24, 1
      %p179 = por %p177, %p178
      %p181 = scmp.ne.s32.totalorder %s164, %s180
      %p182 = scmp.eq.s32.totalorder %s24, 0
      %p183 = por %p181, %p182
      %s185 = sadd.s32 %s184, 1
      %p188 = scmp.eq.s32.totalorder %s18, 1
      %p189 = scmp.ne.s32.totalorder %s184, %s186
      %p190 = scmp.eq.s32.totalorder %s18, 0
      %p191 = por %p189, %p190
      %p192 = scmp.ne.s32.totalorder %s184, %s186
      %p193 = scmp.eq.s32.totalorder %s23, 1
      %p194 = por %p192, %p193
      %p195 = scmp.ne.s32.totalorder %s186, %s187
      %p196 = scmp.eq.s32.totalorder %s23, 0
      %p197 = por %p195, %p196
      %p198 = scmp.ne.s32.totalorder %s186, %s187
      %p199 = scmp.eq.s32.totalorder %s24, 1
      %p200 = por %p198, %p199
      %p202 = scmp.ne.s32.totalorder %s187, %s201
      %p203 = scmp.eq.s32.totalorder %s24, 0
      %p204 = por %p202, %p203
      %s205 = ssub.s32 %s25, %s37
      %p206 = scmp.eq.s32.totalorder %s205, 0
      %s208 = sadd.s32 %s207, 1
      %s209 = scalar_select %p206, %s207, %s208
      %p212 = pneg %p206
      %p213 = scmp.eq.s32.totalorder %s18, 1
      %p214 = por %p212, %p213
      %p215 = scmp.ne.s32.totalorder %s207, %s210
      %p216 = scmp.eq.s32.totalorder %s18, 0
      %p217 = por %p215, %p216
      %p218 = scmp.ne.s32.totalorder %s207, %s210
      %p219 = scmp.eq.s32.totalorder %s23, 1
      %p220 = por %p218, %p219
      %p221 = scmp.ne.s32.totalorder %s210, %s211
      %p222 = scmp.eq.s32.totalorder %s23, 0
      %p223 = por %p221, %p222
      %p224 = scmp.ne.s32.totalorder %s210, %s211
      %p225 = scmp.eq.s32.totalorder %s24, 1
      %p226 = por %p224, %p225
      %p228 = scmp.ne.s32.totalorder %s211, %s227
      %p229 = scmp.eq.s32.totalorder %s24, 0
      %p230 = por %p228, %p229
      %p231 = scmp.le.s32.totalorder 1, %s18
      %p232 = scmp.lt.s32.totalorder %s18, 3
      %p233 = pnand %p231, %p232
      %p234 = pneg %p233
      // Predicated region
      $region9: #{tpu_custom_call.1} parent=5 // pred_check
        _
      $region10: #{tpu_custom_call.1} parent=5 // pred_check_branch
        %236 = sbr.rel (%p233) target = $region12
      $region11: #{tpu_custom_call.1} parent=5 // pred_region
        %s237 = ssub.s32 %s18, 1
        // Predicated region
        $region13: #{tpu_custom_call.1} parent=11 // pred_check
          %p238 = pneg %p56
        $region14: #{tpu_custom_call.1} parent=11 // pred_check_branch
          %240 = sbr.rel (%p238) target = $region16
        $region15: #{tpu_custom_call.1} parent=11 // pred_region
          %s241 = smul.u32 2, %s27
          %s243 = ssub.s32 256, 256
          %244 = vsyncadd [#allocation5], %s243
          %s245 = smul.addr %s241, 128
          %s246 = scalar_lea.hbm %s0, %s245
          %s247 = sshll.u32 [#allocation4], 4
          %s248 = int_to_ptr.vmem [resolvable:$true] %s247
          %253 = dma.hbm_to_vmem [thread:$0]  %s246, 256, %s248, [#allocation5], 128, 128, 8
        $region16: #{tpu_custom_call.1} parent=11 // pred_fallthru
          _
        // Predicated region
        $region17: #{tpu_custom_call.1} parent=11 // pred_check
          %p254 = pneg %p77
        $region18: #{tpu_custom_call.1} parent=11 // pred_check_branch
          %256 = sbr.rel (%p254) target = $region20
        $region19: #{tpu_custom_call.1} parent=11 // pred_region
          _
        $region20: #{tpu_custom_call.1} parent=11 // pred_fallthru
          _
        // Predicated region
        $region21: #{tpu_custom_call.1} parent=11 // pred_check
          %p257 = pneg %p98
        $region22: #{tpu_custom_call.1} parent=11 // pred_check_branch
          %259 = sbr.rel (%p257) target = $region24
        $region23: #{tpu_custom_call.1} parent=11 // pred_region
          _
        $region24: #{tpu_custom_call.1} parent=11 // pred_fallthru
          _
        // Predicated region
        $region25: #{tpu_custom_call.1} parent=11 // pred_check
          %p260 = pneg %p197
        $region26: #{tpu_custom_call.1} parent=11 // pred_check_branch
          %262 = sbr.rel (%p260) target = $region28
        $region27: #{tpu_custom_call.1} parent=11 // pred_region
          _
        $region28: #{tpu_custom_call.1} parent=11 // pred_fallthru
          _
      $region12: #{tpu_custom_call.1} parent=5 // pred_fallthru
        _
      %p263 = scmp.lt.s32.totalorder %s18, 2
      // Predicated region
      $region29: #{tpu_custom_call.1} parent=5 // pred_check
        %p264 = pneg %p263
      $region30: #{tpu_custom_call.1} parent=5 // pred_check_branch
        %266 = sbr.rel (%p264) target = $region32
      $region31: #{tpu_custom_call.1} parent=5 // pred_region
        // Predicated region
        $region33: #{tpu_custom_call.1} parent=31 // pred_check
          %p267 = pneg %p118
        $region34: #{tpu_custom_call.1} parent=31 // pred_check_branch
          %269 = sbr.rel (%p267) target = $region36
        $region35: #{tpu_custom_call.1} parent=31 // pred_region
          %s270 = sand.u32 %s18, 1
          %s271 = scalar_lea.sflag [#allocation8], %s270
          %s272 = sand.u32 %s108, 1
          %s273 = smul.addr %s272, 128
          %s274 = scalar_lea.vmem [#allocation7], %s273
          %s275 = smul.u32 2, %s26
          %s277 = ssub.s32 2048, 2048
          %278 = vsyncadd %s271, %s277
          %s279 = smul.addr %s275, 64
          %s280 = scalar_lea.hbm %s3, %s279
          %s281 = sshll.u32 %s274, 4
          %s282 = int_to_ptr.vmem [resolvable:$true] %s281
          %287 = dma.hbm_to_vmem [thread:$0]  %s280, 2048, %s282, %s271, 256, 128, 8
        $region36: #{tpu_custom_call.1} parent=31 // pred_fallthru
          _
        // Predicated region
        $region37: #{tpu_custom_call.1} parent=31 // pred_check
          %p288 = pneg %p144
        $region38: #{tpu_custom_call.1} parent=31 // pred_check_branch
          %290 = sbr.rel (%p288) target = $region40
        $region39: #{tpu_custom_call.1} parent=31 // pred_region
          %s291 = smul.u32 2, %s26
          %p292 = scmp.lt.s32.totalorder %s291, 3
          %s293 = scalar_select %p292, %s291, 3
          %s294 = scalar_lea.vmem %s4, %s293
          %s295 = smul.u32 2, %s26
        $region40: #{tpu_custom_call.1} parent=31 // pred_fallthru
          _
        // Predicated region
        $region41: #{tpu_custom_call.1} parent=31 // pred_check
          %p296 = pneg %p170
        $region42: #{tpu_custom_call.1} parent=31 // pred_check_branch
          %298 = sbr.rel (%p296) target = $region44
        $region43: #{tpu_custom_call.1} parent=31 // pred_region
          %s299 = sand.u32 %s18, 1
          %s300 = scalar_lea.sflag [#allocation8], %s299
          %s301 = sand.u32 %s160, 1
          %s302 = smul.addr %s301, 128
          %s303 = scalar_lea.vmem [#allocation9], %s302
          %s304 = smul.u32 32, %s26
          %s306 = ssub.s32 2048, 2048
          %307 = vsyncadd %s300, %s306
          %s308 = smul.addr %s304, 64
          %s309 = scalar_lea.hbm %s5, %s308
          %s310 = sshll.u32 %s303, 4
          %s311 = int_to_ptr.vmem [resolvable:$true] %s310
          %316 = dma.hbm_to_vmem [thread:$0]  %s309, 2048, %s311, %s300, 64, 64, 4
        $region44: #{tpu_custom_call.1} parent=31 // pred_fallthru
          _
      $region32: #{tpu_custom_call.1} parent=5 // pred_fallthru
        _
      %p317 = scmp.le.s32.totalorder 1, %s18
      %p318 = scmp.lt.s32.totalorder %s18, 3
      %p319 = pnand %p317, %p318
      %p320 = pneg %p319
      // Predicated region
      $region45: #{tpu_custom_call.1} parent=5 // pred_check
        _
      $region46: #{tpu_custom_call.1} parent=5 // pred_check_branch
        %322 = sbr.rel (%p319) target = $region48
      $region47: #{tpu_custom_call.1} parent=5 // pred_region
        %s323 = ssub.s32 %s18, 1
        // Predicated region
        $region49: #{tpu_custom_call.1} parent=47 // pred_check
          %p324 = pneg %p56
        $region50: #{tpu_custom_call.1} parent=47 // pred_check_branch
          %326 = sbr.rel (%p324) target = $region52
        $region51: #{tpu_custom_call.1} parent=47 // pred_region
          %327 = dma.done [#allocation5], 256
        $region52: #{tpu_custom_call.1} parent=47 // pred_fallthru
          _
        %s328 = sand.u32 %s23, 1
        %s329 = scalar_lea.sflag [#allocation8], %s328
        %s330 = sand.u32 %s111, 1
        %s331 = smul.addr %s330, 128
        %s332 = scalar_lea.vmem [#allocation7], %s331
        // Predicated region
        $region53: #{tpu_custom_call.1} parent=47 // pred_check
          %p333 = pneg %p124
        $region54: #{tpu_custom_call.1} parent=47 // pred_check_branch
          %335 = sbr.rel (%p333) target = $region56
        $region55: #{tpu_custom_call.1} parent=47 // pred_region
          %336 = dma.done %s329, 2048
        $region56: #{tpu_custom_call.1} parent=47 // pred_fallthru
          _
        %s337 = sand.u32 %s23, 1
        %s338 = scalar_lea.sflag [#allocation8], %s337
        %s339 = sand.u32 %s163, 1
        %s340 = smul.addr %s339, 128
        %s341 = scalar_lea.vmem [#allocation9], %s340
        // Predicated region
        $region57: #{tpu_custom_call.1} parent=47 // pred_check
          %p342 = pneg %p176
        $region58: #{tpu_custom_call.1} parent=47 // pred_check_branch
          %344 = sbr.rel (%p342) target = $region60
        $region59: #{tpu_custom_call.1} parent=47 // pred_region
          %345 = dma.done %s338, 2048
        $region60: #{tpu_custom_call.1} parent=47 // pred_fallthru
          _
        %p346 = pneg %p56
        %p347 = pneg %p53
        %p348 = pneg %p77
        %p349 = pneg %p74
        %p350 = pneg %p98
        %p351 = pneg %p95
        %s352 = sand.u32 %s23, 1
        %s353 = scalar_lea.sflag [#allocation8], %s352
        %s354 = sand.u32 %s111, 1
        %s355 = smul.addr %s354, 128
        %s356 = scalar_lea.vmem [#allocation7], %s355
        %p357 = pneg %p124
        %p358 = pneg %p121
        %s359 = smul.u32 2, %s28
        %p360 = scmp.lt.s32.totalorder %s359, 3
        %s361 = scalar_select %p360, %s359, 3
        %s362 = scalar_lea.vmem %s4, %s361
        %p363 = pneg %p150
        %p364 = pneg %p147
        %s365 = sand.u32 %s23, 1
        %s366 = scalar_lea.sflag [#allocation8], %s365
        %s367 = sand.u32 %s163, 1
        %s368 = smul.addr %s367, 128
        %s369 = scalar_lea.vmem [#allocation9], %s368
        %p370 = pneg %p176
        %p371 = pneg %p173
        %p372 = pneg %p197
        %p373 = pneg %p194
        %p374 = pneg %p223
        %p375 = pneg %p220
        %s376 = smul.u32 2, %s27
        %s377 = smul.u32 2, %s28
        %s378 = smul.u32 2, %s28
        %p379 = scmp.lt.s32.totalorder %s378, 3
        %s380 = scalar_select %p379, %s378, 3
        %s381 = scalar_lea.vmem %s4, %s380
        %s382 = smul.u32 2, %s28
        %s383 = smul.u32 32, %s28
        %s384 = smul.u32 2, %s27
        %p386 = scmp.eq.s32.totalorder %s28, 0
        // Predicated region
        $region61: #{tpu_custom_call.1} parent=47 // pred_check
          %p387 = pneg %p386
        $region62: #{tpu_custom_call.1} parent=47 // pred_check_branch
          %389 = sbr.rel (%p387) target = $region64
        $region63: #{tpu_custom_call.1} parent=47 // pred_region
          %v390 = vld [vmem:[#allocation4] sm:$0xff]
          %v391 = vld [vmem:[#allocation4 + $0x8] sm:$0xff]
          %392 = vadd.xlane.f32.xlu0 %v390
          %v393 = vpop.xlane.xlu0 %392
          %394 = vadd.xlane.f32.xlu0 %v391
          %v395 = vpop.xlane.xlu0 %394
          %v396 = vrcp.pop 128.0
          %v397 = vmul.f32 %v393, %v396
          %v398 = vmul.f32 %v395, %v396
          %v399 = vsub.f32 %v390, %v397
          %v400 = vsub.f32 %v391, %v398
          %v401 = vmul.f32 %v399, %v399
          %v402 = vmul.f32 %v400, %v400
          %403 = vadd.xlane.f32.xlu0 %v401
          %v404 = vpop.xlane.xlu0 %403
          %405 = vadd.xlane.f32.xlu0 %v402
          %v406 = vpop.xlane.xlu0 %405
          %v407 = vmul.f32 %v404, %v396
          %v408 = vmul.f32 %v406, %v396
          %v409 = vadd.f32 %v407, 1e-05
          %v410 = vadd.f32 %v408, 1e-05
          %v411 = vrsqrt.pop %v409
          %v412 = vrsqrt.pop %v410
          %v413 = vmul.f32 %v399, %v411
          %v414 = vmul.f32 %v400, %v412
          %v415 = vld [vmem:[%s1] sm:$0x1]
          %v417 = vlaneseq
          %v418 = vshrl.u32 %v417, 7
          %v419 = vsub.s32 0, %v418
          %v420 = vrot.slane %v415, %v419
          %v422 = vmul.f32 %v413, %v420
          %v423 = vmul.f32 %v414, %v420
          %v424 = vld [vmem:[%s2] sm:$0x1]
          %v426 = vlaneseq
          %v427 = vshrl.u32 %v426, 7
          %v428 = vsub.s32 0, %v427
          %v429 = vrot.slane %v424, %v428
          %v431 = vadd.f32 %v422, %v429
          %v432 = vadd.f32 %v423, %v429
          %v433 = vpack.c.bf16 %v432, %v431
          %434 = vst [vmem:[#allocation3] sm:$0xff] %v433
          %435 = vst [vmem:[#allocation2] sm:$0xff] 0.0
          %436 = vst [vmem:[#allocation2 + $0x8] sm:$0xff] 0.0
        $region64: #{tpu_custom_call.1} parent=47 // pred_fallthru
          _
        %v437 = vld [vmem:[#allocation3] sm:$0xff]
        %v438 = vld [vmem:[%s332] sm:$0xff]
        %v439 = vld [vmem:[%s332 + $0x8] sm:$0xff]
        %v440 = vld [vmem:[%s332 + $0x10] sm:$0xff]
        %v441 = vld [vmem:[%s332 + $0x18] sm:$0xff]
        %v442 = vld [vmem:[%s332 + $0x20] sm:$0xff]
        %v443 = vld [vmem:[%s332 + $0x28] sm:$0xff]
        %v444 = vld [vmem:[%s332 + $0x30] sm:$0xff]
        %v445 = vld [vmem:[%s332 + $0x38] sm:$0xff]
        %v446 = vld [vmem:[%s332 + $0x40] sm:$0xff]
        %v447 = vld [vmem:[%s332 + $0x48] sm:$0xff]
        %v448 = vld [vmem:[%s332 + $0x50] sm:$0xff]
        %v449 = vld [vmem:[%s332 + $0x58] sm:$0xff]
        %v450 = vld [vmem:[%s332 + $0x60] sm:$0xff]
        %v451 = vld [vmem:[%s332 + $0x68] sm:$0xff]
        %v452 = vld [vmem:[%s332 + $0x70] sm:$0xff]
        %v453 = vld [vmem:[%s332 + $0x78] sm:$0xff]
        %v454 = vld [vmem:[%s381] sm:$0x3]
        %v456 = vlaneseq
        %v457 = vshrl.u32 %v456, 7
        %v458 = vsub.s32 0, %v457
        %v459 = vrot.slane %v454, %v458
        %v460 = vlaneseq
        %v461 = vshrl.u32 %v460, 7
        %v462 = vsub.s32 1, %v461
        %v463 = vrot.slane %v454, %v462
        %v482 = vunpack.c.l.b16 %v438
        %v483 = vunpack.c.h.b16 %v438
        %v484 = vunpack.c.l.b16 %v439
        %v485 = vunpack.c.h.b16 %v439
        %v486 = vunpack.c.l.b16 %v440
        %v487 = vunpack.c.h.b16 %v440
        %v488 = vunpack.c.l.b16 %v441
        %v489 = vunpack.c.h.b16 %v441
        %v490 = vunpack.c.l.b16 %v442
        %v491 = vunpack.c.h.b16 %v442
        %v492 = vunpack.c.l.b16 %v443
        %v493 = vunpack.c.h.b16 %v443
        %v494 = vunpack.c.l.b16 %v444
        %v495 = vunpack.c.h.b16 %v444
        %v496 = vunpack.c.l.b16 %v445
        %v497 = vunpack.c.h.b16 %v445
        %v498 = vunpack.c.l.b16 %v446
        %v499 = vunpack.c.h.b16 %v446
        %v500 = vunpack.c.l.b16 %v447
        %v501 = vunpack.c.h.b16 %v447
        %v502 = vunpack.c.l.b16 %v448
        %v503 = vunpack.c.h.b16 %v448
        %v504 = vunpack.c.l.b16 %v449
        %v505 = vunpack.c.h.b16 %v449
        %v506 = vunpack.c.l.b16 %v450
        %v507 = vunpack.c.h.b16 %v450
        %v508 = vunpack.c.l.b16 %v451
        %v509 = vunpack.c.h.b16 %v451
        %v510 = vunpack.c.l.b16 %v452
        %v511 = vunpack.c.h.b16 %v452
        %v512 = vunpack.c.l.b16 %v453
        %v513 = vunpack.c.h.b16 %v453
        %v514 = vpack.c.b16 %v484, %v482
        %v515 = vpack.c.b16 %v485, %v483
        %v516 = vpack.c.b16 %v488, %v486
        %v517 = vpack.c.b16 %v489, %v487
        %v518 = vpack.c.b16 %v492, %v490
        %v519 = vpack.c.b16 %v493, %v491
        %v520 = vpack.c.b16 %v496, %v494
        %v521 = vpack.c.b16 %v497, %v495
        %v522 = vpack.c.b16 %v500, %v498
        %v523 = vpack.c.b16 %v501, %v499
        %v524 = vpack.c.b16 %v504, %v502
        %v525 = vpack.c.b16 %v505, %v503
        %v526 = vpack.c.b16 %v508, %v506
        %v527 = vpack.c.b16 %v509, %v507
        %v528 = vpack.c.b16 %v512, %v510
        %v529 = vpack.c.b16 %v513, %v511
        %546 = vmatprep.subr.bf16.mxu0 %v515
        %547 = vmatpush1.bf16.msra.mxu0 %v514
        %548 = vmatprep.subr.bf16.mxu0 %v517
        %549 = vmatpush1.bf16.msra.mxu0 %v516
        %550 = vmatprep.subr.bf16.mxu0 %v519
        %551 = vmatpush1.bf16.msra.mxu0 %v518
        %552 = vmatprep.subr.bf16.mxu0 %v521
        %553 = vmatpush1.bf16.msra.mxu0 %v520
        %554 = vmatprep.subr.bf16.mxu0 %v523
        %555 = vmatpush1.bf16.msra.mxu0 %v522
        %556 = vmatprep.subr.bf16.mxu0 %v525
        %557 = vmatpush1.bf16.msra.mxu0 %v524
        %558 = vmatprep.subr.bf16.mxu0 %v527
        %559 = vmatpush1.bf16.msra.mxu0 %v526
        %560 = vmatprep.subr.bf16.mxu0 %v529
        %561 = vmatpush1.bf16.msra.mxu0 %v528
        %562 = vmatprep.subr.bf16.mxu0 0
        %563 = vmatpush1.bf16.msra.mxu0 0
        %564 = vmatprep.subr.bf16.mxu0 0
        %565 = vmatpush1.bf16.msra.mxu0 0
        %566 = vmatprep.subr.bf16.mxu0 0
        %567 = vmatpush1.bf16.msra.mxu0 0
        %568 = vmatprep.subr.bf16.mxu0 0
        %569 = vmatpush1.bf16.msra.mxu0 0
        %570 = vmatprep.subr.bf16.mxu0 0
        %571 = vmatpush1.bf16.msra.mxu0 0
        %572 = vmatprep.subr.bf16.mxu0 0
        %573 = vmatpush1.bf16.msra.mxu0 0
        %574 = vmatprep.subr.bf16.mxu0 0
        %575 = vmatpush1.bf16.msra.mxu0 0
        %576 = vmatprep.subr.bf16.mxu0 0
        %577 = vmatpush1.bf16.msra.mxu0 0
        %578 = vmatprep.mubr.bf16.mxu0 0
        %579 = vmatmul.mubr.bf16.gmra.mrb[0].mxu0 %v437
        %v580 = vpop.f32.mrb[0].mxu0
        %v581 = vadd.f32 %v459, %v580
        %v582 = vpop.f32.mrb[0].mxu0
        %v583 = vadd.f32 %v463, %v582
        %v584 = vpop.f32.mrb[0].mxu0
        %v585 = vadd.f32 %v459, %v584
        %v586 = vpop.f32.mrb[0].mxu0
        %v587 = vadd.f32 %v463, %v586
        %588 = vdwg.mxu0
        %v589 = vmul.f32 %v581, 0.5
        %v590 = vmul.f32 %v583, 0.5
        %v591 = vmul.f32 %v585, 0.5
        %v592 = vmul.f32 %v587, 0.5
        %v593 = vmul.f32 %v581, 0.70710677
        %v594 = vmul.f32 %v583, 0.70710677
        %v595 = vmul.f32 %v585, 0.70710677
        %v596 = vmul.f32 %v587, 0.70710677
        %v597 = verf.f32.pop %v593
        %v598 = verf.f32.pop %v594
        %v599 = verf.f32.pop %v595
        %v600 = verf.f32.pop %v596
        %v601 = vadd.f32 %v597, 1.0
        %v602 = vadd.f32 %v598, 1.0
        %v603 = vadd.f32 %v599, 1.0
        %v604 = vadd.f32 %v600, 1.0
        %v605 = vmul.f32 %v589, %v601
        %v606 = vmul.f32 %v590, %v602
        %v607 = vmul.f32 %v591, %v603
        %v608 = vmul.f32 %v592, %v604
        %v609 = vld [vmem:[#allocation2] sm:$0xff]
        %v610 = vld [vmem:[#allocation2 + $0x8] sm:$0xff]
        %v611 = vpack.c.bf16 %v607, %v605
        %v612 = vpack.c.bf16 %v608, %v606
        %v613 = vld [vmem:[%s341] sm:$0xf]
        %v614 = vld [vmem:[%s341 + $0x4] sm:$0xf]
        %v615 = vld [vmem:[%s341 + $0x8] sm:$0xf]
        %v616 = vld [vmem:[%s341 + $0xc] sm:$0xf]
        %v617 = vld [vmem:[%s341 + $0x10] sm:$0xf]
        %v618 = vld [vmem:[%s341 + $0x14] sm:$0xf]
        %v619 = vld [vmem:[%s341 + $0x18] sm:$0xf]
        %v620 = vld [vmem:[%s341 + $0x1c] sm:$0xf]
        %v621 = vld [vmem:[%s341 + $0x20] sm:$0xf]
        %v622 = vld [vmem:[%s341 + $0x24] sm:$0xf]
        %v623 = vld [vmem:[%s341 + $0x28] sm:$0xf]
        %v624 = vld [vmem:[%s341 + $0x2c] sm:$0xf]
        %v625 = vld [vmem:[%s341 + $0x30] sm:$0xf]
        %v626 = vld [vmem:[%s341 + $0x34] sm:$0xf]
        %v627 = vld [vmem:[%s341 + $0x38] sm:$0xf]
        %v628 = vld [vmem:[%s341 + $0x3c] sm:$0xf]
        %v629 = vld [vmem:[%s341 + $0x40] sm:$0xf]
        %v630 = vld [vmem:[%s341 + $0x44] sm:$0xf]
        %v631 = vld [vmem:[%s341 + $0x48] sm:$0xf]
        %v632 = vld [vmem:[%s341 + $0x4c] sm:$0xf]
        %v633 = vld [vmem:[%s341 + $0x50] sm:$0xf]
        %v634 = vld [vmem:[%s341 + $0x54] sm:$0xf]
        %v635 = vld [vmem:[%s341 + $0x58] sm:$0xf]
        %v636 = vld [vmem:[%s341 + $0x5c] sm:$0xf]
        %v637 = vld [vmem:[%s341 + $0x60] sm:$0xf]
        %v638 = vld [vmem:[%s341 + $0x64] sm:$0xf]
        %v639 = vld [vmem:[%s341 + $0x68] sm:$0xf]
        %v640 = vld [vmem:[%s341 + $0x6c] sm:$0xf]
        %v641 = vld [vmem:[%s341 + $0x70] sm:$0xf]
        %v642 = vld [vmem:[%s341 + $0x74] sm:$0xf]
        %v643 = vld [vmem:[%s341 + $0x78] sm:$0xf]
        %v644 = vld [vmem:[%s341 + $0x7c] sm:$0xf]
        %v677 = vunpack.c.l.b16 %v613
        %v678 = vunpack.c.l.b16 %v614
        %v679 = vunpack.c.l.b16 %v615
        %v680 = vunpack.c.l.b16 %v616
        %v681 = vunpack.c.l.b16 %v617
        %v682 = vunpack.c.l.b16 %v618
        %v683 = vunpack.c.l.b16 %v619
        %v684 = vunpack.c.l.b16 %v620
        %v685 = vunpack.c.l.b16 %v621
        %v686 = vunpack.c.l.b16 %v622
        %v687 = vunpack.c.l.b16 %v623
        %v688 = vunpack.c.l.b16 %v624
        %v689 = vunpack.c.l.b16 %v625
        %v690 = vunpack.c.l.b16 %v626
        %v691 = vunpack.c.l.b16 %v627
        %v692 = vunpack.c.l.b16 %v628
        %v693 = vunpack.c.l.b16 %v629
        %v694 = vunpack.c.l.b16 %v630
        %v695 = vunpack.c.l.b16 %v631
        %v696 = vunpack.c.l.b16 %v632
        %v697 = vunpack.c.l.b16 %v633
        %v698 = vunpack.c.l.b16 %v634
        %v699 = vunpack.c.l.b16 %v635
        %v700 = vunpack.c.l.b16 %v636
        %v701 = vunpack.c.l.b16 %v637
        %v702 = vunpack.c.l.b16 %v638
        %v703 = vunpack.c.l.b16 %v639
        %v704 = vunpack.c.l.b16 %v640
        %v705 = vunpack.c.l.b16 %v641
        %v706 = vunpack.c.l.b16 %v642
        %v707 = vunpack.c.l.b16 %v643
        %v708 = vunpack.c.l.b16 %v644
        %v709 = vpack.c.b16 %v678, %v677
        %v710 = vpack.c.b16 %v680, %v679
        %v711 = vpack.c.b16 %v682, %v681
        %v712 = vpack.c.b16 %v684, %v683
        %v713 = vpack.c.b16 %v686, %v685
        %v714 = vpack.c.b16 %v688, %v687
        %v715 = vpack.c.b16 %v690, %v689
        %v716 = vpack.c.b16 %v692, %v691
        %v717 = vpack.c.b16 %v694, %v693
        %v718 = vpack.c.b16 %v696, %v695
        %v719 = vpack.c.b16 %v698, %v697
        %v720 = vpack.c.b16 %v700, %v699
        %v721 = vpack.c.b16 %v702, %v701
        %v722 = vpack.c.b16 %v704, %v703
        %v723 = vpack.c.b16 %v706, %v705
        %v724 = vpack.c.b16 %v708, %v707
        %741 = vmatprep.subr.bf16.mxu0 0
        %742 = vmatpush1.bf16.msra.mxu0 %v709
        %743 = vmatprep.subr.bf16.mxu0 0
        %744 = vmatpush1.bf16.msra.mxu0 %v710
        %745 = vmatprep.subr.bf16.mxu0 0
        %746 = vmatpush1.bf16.msra.mxu0 %v711
        %747 = vmatprep.subr.bf16.mxu0 0
        %748 = vmatpush1.bf16.msra.mxu0 %v712
        %749 = vmatprep.subr.bf16.mxu0 0
        %750 = vmatpush1.bf16.msra.mxu0 %v713
        %751 = vmatprep.subr.bf16.mxu0 0
        %752 = vmatpush1.bf16.msra.mxu0 %v714
        %753 = vmatprep.subr.bf16.mxu0 0
        %754 = vmatpush1.bf16.msra.mxu0 %v715
        %755 = vmatprep.subr.bf16.mxu0 0
        %756 = vmatpush1.bf16.msra.mxu0 %v716
        %757 = vmatprep.subr.bf16.mxu0 0
        %758 = vmatpush1.bf16.msra.mxu0 %v717
        %759 = vmatprep.subr.bf16.mxu0 0
        %760 = vmatpush1.bf16.msra.mxu0 %v718
        %761 = vmatprep.subr.bf16.mxu0 0
        %762 = vmatpush1.bf16.msra.mxu0 %v719
        %763 = vmatprep.subr.bf16.mxu0 0
        %764 = vmatpush1.bf16.msra.mxu0 %v720
        %765 = vmatprep.subr.bf16.mxu0 0
        %766 = vmatpush1.bf16.msra.mxu0 %v721
        %767 = vmatprep.subr.bf16.mxu0 0
        %768 = vmatpush1.bf16.msra.mxu0 %v722
        %769 = vmatprep.subr.bf16.mxu0 0
        %770 = vmatpush1.bf16.msra.mxu0 %v723
        %771 = vmatprep.subr.bf16.mxu0 0
        %772 = vmatpush1.bf16.msra.mxu0 %v724
        %773 = vmatprep.mubr.bf16.mxu0 %v612
        %774 = vmatmul.mubr.bf16.gmra.mrb[0].mxu0 %v611
        %v775 = vpop.f32.mrb[0].mxu0
        %v776 = vadd.f32 0.0, %v775
        %v777 = vpop.f32.mrb[0].mxu0
        %v778 = vpop.f32.mrb[0].mxu0
        %v779 = vadd.f32 0.0, %v778
        %v780 = vpop.f32.mrb[0].mxu0
        %781 = vdwg.mxu0
        %v782 = vadd.f32 %v609, %v776
        %v783 = vadd.f32 %v610, %v779
        %784 = vst [vmem:[#allocation2] sm:$0xff] %v782
        %785 = vst [vmem:[#allocation2 + $0x8] sm:$0xff] %v783
        %p786 = scmp.eq.s32.totalorder %s28, 1
        // Predicated region
        $region65: #{tpu_custom_call.1} parent=47 // pred_check
          %p787 = pneg %p786
        $region66: #{tpu_custom_call.1} parent=47 // pred_check_branch
          %789 = sbr.rel (%p787) target = $region68
        $region67: #{tpu_custom_call.1} parent=47 // pred_region
          %v790 = vld [vmem:[#allocation2] sm:$0xff]
          %v791 = vld [vmem:[#allocation2 + $0x8] sm:$0xff]
          %v792 = vld [vmem:[%s6] sm:$0x1]
          %v794 = vlaneseq
          %v795 = vshrl.u32 %v794, 7
          %v796 = vsub.s32 0, %v795
          %v797 = vrot.slane %v792, %v796
          %v799 = vadd.f32 %v790, %v797
          %v800 = vadd.f32 %v791, %v797
          %801 = vst [vmem:[#allocation10] sm:$0xff] %v799
          %802 = vst [vmem:[#allocation10 + $0x8] sm:$0xff] %v800
        $region68: #{tpu_custom_call.1} parent=47 // pred_fallthru
          _
        // Predicated region
        $region69: #{tpu_custom_call.1} parent=47 // pred_check
          %p803 = pneg %p220
        $region70: #{tpu_custom_call.1} parent=47 // pred_check_branch
          %805 = sbr.rel (%p803) target = $region72
        $region71: #{tpu_custom_call.1} parent=47 // pred_region
          %s806 = smul.u32 2, %s27
          %s808 = ssub.s32 256, 256
          %809 = vsyncadd [#allocation6], %s808
          %s810 = smul.addr %s806, 128
          %s811 = scalar_lea.hbm %s7, %s810
          %s812 = sshll.u32 [#allocation10], 4
          %s813 = int_to_ptr.vmem [resolvable:$true] %s812
          %818 = dma.vmem_to_hbm [thread:$0]  %s813, 256, %s811, [#allocation6], 128, 128, 8
        $region72: #{tpu_custom_call.1} parent=47 // pred_fallthru
          _
        // Predicated region
        $region73: #{tpu_custom_call.1} parent=47 // pred_check
          %p819 = pneg %p220
        $region74: #{tpu_custom_call.1} parent=47 // pred_check_branch
          %821 = sbr.rel (%p819) target = $region76
        $region75: #{tpu_custom_call.1} parent=47 // pred_region
          %822 = dma.done [#allocation6], 256
        $region76: #{tpu_custom_call.1} parent=47 // pred_fallthru
          _
      $region48: #{tpu_custom_call.1} parent=5 // pred_fallthru
        _
      %p823 = scmp.le.s32.totalorder 2, %s18
      // Predicated region
      $region77: #{tpu_custom_call.1} parent=5 // pred_check
        %p824 = pneg %p823
      $region78: #{tpu_custom_call.1} parent=5 // pred_check_branch
        %826 = sbr.rel (%p824) target = $region80
      $region79: #{tpu_custom_call.1} parent=5 // pred_region
        %s827 = ssub.s32 %s18, 2
      $region80: #{tpu_custom_call.1} parent=5 // pred_fallthru
        _
    $region6: #{tpu_custom_call.1} parent=1 // loop_footer
      %s22 = sadd.s32 1, %s18
    $region7: #{tpu_custom_call.1} parent=1 // loop_footer_branch
      %17 = sbr.rel target = $region3
    $region8: #{tpu_custom_call.1} parent=1 // loop_exit
      _
    %828 = vsyncpa [#allocation5], 1
    %s829 = scalar_lea.sflag [#allocation5], 1
    %830 = vsyncpa %s829, 1
    %831 = vsyncpa [#allocation8], 1
    %s832 = scalar_lea.sflag [#allocation8], 1
    %833 = vsyncpa %s832, 1
    %834 = vsyncpa [#allocation6], 1
    %s835 = scalar_lea.sflag [#allocation6], 1
    %836 = vsyncpa %s835, 1

</llo_original>
